<compile_context>
chip_gen: v5e
topology: v5e:2x2
jax: 0.10.0
libtpu: 0.0.40
codegen_flags: <defaults>
</compile_context>

<pallas_src>
import jax
import jax.numpy as jnp
from jax.experimental import pallas as pl
from jax.experimental.pallas import tpu as pltpu

IN_DIM = 4
HID_DIM = 8
OUT_DIM = 4
LANE = 128
PACK = LANE // IN_DIM  # 32 batch rows packed per 128-lane vector row


def mlp_kernel(w_ref, b_ref, x_ref, o_ref):
    """w_ref: (128, 128) VMEM -- kron(I_32, W_eff), block-diagonal fused weight
       b_ref: (1, 128)   VMEM -- tile(b_eff, 32)
       x_ref: (tile_rows, 128) VMEM -- 32 batch rows of (B, 4) packed per row
       o_ref: (tile_rows, 128) VMEM"""
    acc = jnp.dot(x_ref[...], w_ref[...], preferred_element_type=jnp.float32)
    o_ref[...] = (acc + b_ref[...]).astype(o_ref.dtype)


def mlp_forward(x, w1, b1, w2, b2, *, tile_rows=8192):
    """x: (B, 4); w1: (4, 8); b1: (8,); w2: (8, 4); b2: (4,).  Returns (B, 4).
    Weights are stored as (in_features, out_features) (transpose of PyTorch's
    layout), so the math is out = (x @ w1 + b1) @ w2 + b2."""
    B = x.shape[0]
    dtype = x.dtype

    # Exact layer fusion (no activation between the two Linears).
    w_eff = jnp.dot(w1, w2, preferred_element_type=jnp.float32)        # (4, 4)
    b_eff = jnp.dot(b1, w2, preferred_element_type=jnp.float32) + b2   # (4,)

    # 128x128 block-diagonal weight + tiled bias for the packed layout.
    w128 = jnp.kron(jnp.eye(PACK, dtype=jnp.float32), w_eff).astype(dtype)  # (128, 128)
    b128 = jnp.tile(b_eff, PACK).reshape(1, LANE).astype(jnp.float32)       # (1, 128)

    # Pad the batch only up to a multiple of 32 (at most 31 tiny rows), then
    # reshape zero-copy to packed 128-lane rows.
    b_pad = ((B + PACK - 1) // PACK) * PACK
    xp = x if b_pad == B else jnp.pad(x, ((0, b_pad - B), (0, 0)))
    n_rows = (b_pad * IN_DIM) // LANE
    x2 = xp.reshape(n_rows, LANE)          # row-major contiguous -> zero-copy

    # Tile the packed-row axis.  Default 8192 rows = 4 MiB (f32) per tile, so
    # ~8 MiB HBM traffic per grid step; double-buffered in+out ~16 MiB VMEM.
    if n_rows <= tile_rows:
        tile_rows = n_rows                 # full extent (any size allowed)
    else:
        tile_rows = (tile_rows // 8) * 8   # keep sublane (8) divisibility
    n_tiles = pl.cdiv(n_rows, tile_rows)   # partial final block handled by Pallas

    itemsize = jnp.dtype(dtype).itemsize
    cost = pl.CostEstimate(
        flops=2 * n_rows * LANE * LANE,
        transcendentals=0,
        bytes_accessed=2 * n_rows * LANE * itemsize + (LANE * LANE + LANE) * 4,
    )

    out2 = pl.pallas_call(
        mlp_kernel,
        out_shape=jax.ShapeDtypeStruct((n_rows, LANE), dtype),
        grid_spec=pltpu.PrefetchScalarGridSpec(
            num_scalar_prefetch=0,
            grid=(n_tiles,),
            in_specs=[
                pl.BlockSpec((LANE, LANE), lambda i: (0, 0)),       # w128 (resident)
                pl.BlockSpec((1, LANE), lambda i: (0, 0)),          # b128 (resident)
                pl.BlockSpec((tile_rows, LANE), lambda i: (i, 0)),  # x tile
            ],
            out_specs=pl.BlockSpec((tile_rows, LANE), lambda i: (i, 0)),
        ),
        compiler_params=pltpu.CompilerParams(
            dimension_semantics=("parallel",),
            vmem_limit_bytes=32 * 1024 * 1024,
        ),
        cost_estimate=cost,
    )(w128, b128, x2)

    out = out2.reshape(b_pad, OUT_DIM)     # zero-copy
    return out if b_pad == B else out[:B]


def reference_forward(x, w1, b1, w2, b2):
    h = x @ w1 + b1
    return h @ w2 + b2


if __name__ == "__main__":
    key = jax.random.PRNGKey(0)
    kx, k1, k2, k3, k4 = jax.random.split(key, 5)

    # Deterministic parameter init (uniform like PyTorch's default fan-in bound).
    bound1 = 1.0 / (IN_DIM ** 0.5)
    bound2 = 1.0 / (HID_DIM ** 0.5)
    w1 = jax.random.uniform(k1, (IN_DIM, HID_DIM), jnp.float32, -bound1, bound1)
    b1 = jax.random.uniform(k2, (HID_DIM,), jnp.float32, -bound1, bound1)
    w2 = jax.random.uniform(k3, (HID_DIM, OUT_DIM), jnp.float32, -bound2, bound2)
    b2 = jax.random.uniform(k4, (OUT_DIM,), jnp.float32, -bound2, bound2)

    # Small batches: exercise the pad path (8 -> 32), an exact-pack batch (96),
    # and a pad-to-multiple-of-32 batch (50).
    for B in (8, 96, 50):
        x = jax.random.normal(jax.random.fold_in(kx, B), (B, IN_DIM), jnp.float32)
        out = jax.block_until_ready(mlp_forward(x, w1, b1, w2, b2))
        ref = reference_forward(x, w1, b1, w2, b2)
        assert out.shape == (B, OUT_DIM)
        assert jnp.allclose(out, ref, atol=1e-4, rtol=1e-4), f"mismatch at B={B}"

    print("KERNEL_OK")
</pallas_src>

<mosaic_0001>
module attributes {stable_mosaic.version = 11 : i64} {
  func.func @mlp_kernel(%arg0: i32, %arg1: memref<128x128xf32, #tpu.memory_space<vmem>>, %arg2: memref<1x128xf32, #tpu.memory_space<vmem>>, %arg3: memref<1x128xf32, #tpu.memory_space<vmem>>, %arg4: memref<1x128xf32, #tpu.memory_space<vmem>>) attributes {dimension_semantics = [#tpu.dimension_semantics<parallel>], iteration_bounds = array<i64: 1>, scalar_prefetch = 0 : i64, scratch_operands = 0 : i64, tpu.core_type = #tpu.core_type<tc>, window_params = [{pipeline_mode = #tpu.pipeline_mode<synchronous>, transform_indices = @transform_0, window_bounds = array<i64: 128, 128>}, {pipeline_mode = #tpu.pipeline_mode<synchronous>, transform_indices = @transform_1, window_bounds = array<i64: 1, 128>}, {transform_indices = @transform_2, window_bounds = array<i64: 1, 128>}, {transform_indices = @transform_3, window_bounds = array<i64: 1, 128>}]} {
    %c0 = arith.constant 0 : index
    %c0_0 = arith.constant 0 : index
    %0 = vector.load %arg3[%c0, %c0_0] : memref<1x128xf32, #tpu.memory_space<vmem>>, vector<1x128xf32>
    %c0_1 = arith.constant 0 : index
    %c0_2 = arith.constant 0 : index
    %1 = vector.load %arg1[%c0_1, %c0_2] : memref<128x128xf32, #tpu.memory_space<vmem>>, vector<128x128xf32>
    %cst = arith.constant dense<0.000000e+00> : vector<1x128xf32>
    %2 = tpu.matmul %0, %1, %cst {dimension_numbers = #tpu.dot_dimension_numbers<[1], [0], [0], [1], [0, 0, 1, 1], [], []>} : vector<1x128xf32>, vector<128x128xf32>, vector<1x128xf32> -> vector<1x128xf32>
    %c0_3 = arith.constant 0 : index
    %c0_4 = arith.constant 0 : index
    %3 = vector.load %arg2[%c0_3, %c0_4] : memref<1x128xf32, #tpu.memory_space<vmem>>, vector<1x128xf32>
    %4 = arith.addf %2, %3 : vector<1x128xf32>
    %c0_5 = arith.constant 0 : index
    %c0_6 = arith.constant 0 : index
    %5 = vector.load %arg4[%c0_5, %c0_6] : memref<1x128xf32, #tpu.memory_space<vmem>>, vector<1x128xf32>
    tpu.vector_store %arg4[%c0_5, %c0_6], %4 {strides = array<i32>} : memref<1x128xf32, #tpu.memory_space<vmem>>, vector<1x128xf32>,
    return
  }
  func.func @transform_0(%arg0: i32) -> (i32, i32) {
    %c0_i32 = arith.constant 0 : i32
    %c0_i32_0 = arith.constant 0 : i32
    %c0_i32_1 = arith.constant 0 : i32
    return %c0_i32, %c0_i32_0 : i32, i32
  }
  func.func @transform_1(%arg0: i32) -> (i32, i32) {
    %c0_i32 = arith.constant 0 : i32
    %c0_i32_0 = arith.constant 0 : i32
    %c0_i32_1 = arith.constant 0 : i32
    return %c0_i32, %c0_i32_0 : i32, i32
  }
  func.func @transform_2(%arg0: i32) -> (i32, i32) {
    %c0_i32 = arith.constant 0 : i32
    %c0_i32_0 = arith.constant 0 : i32
    return %arg0, %c0_i32 : i32, i32
  }
  func.func @transform_3(%arg0: i32) -> (i32, i32) {
    %c0_i32 = arith.constant 0 : i32
    %c0_i32_0 = arith.constant 0 : i32
    return %arg0, %c0_i32 : i32, i32
  }
}

</mosaic_0001>

<llo_original>
// kernel: tpu_custom_call.1
$region0: #{tpu_custom_call.1}
  #allocation0 [shape = 'u32[]', space=smem, size = 0x4, offset = 0x4, fixed_abs, tag = 'smem constant byte address 0x4 - core index']
  #allocation1 [shape = 'u32[72,128]{1,0:T(1,128)}', space=vmem, size = 0x9000, scoped, tag = 'internal scratch']
  %s0 = inlined_call_operand.hbm [shape: f32[128,128], index: 0, kind: input, shape index: {}]
  %s1 = inlined_call_operand.hbm [shape: f32[1,128], index: 1, kind: input, shape index: {}]
  %s2 = inlined_call_operand.vmem [shape: f32[1,128], index: 2, kind: input, shape index: {}]
  %s3 = inlined_call_operand.hbm [shape: f32[1,128], index: 3, kind: output, shape index: {}]
  %s4 = sld [smem:[#allocation0]]
  $region30: #{tpu_custom_call.1} parent=0
    _
  %s6 = ssub.s32 1, %s4
  %s7 = scalar_select 0, %s6, %s4
  $region1: #{tpu_custom_call.1} parent=0
    #allocation2 [shape = 'u8[65536]{0}', space=vmem, size = 0x10000, scoped, tag = 'input window, operand 0, single buffered']
    #allocation3 [shape = 's32[1]{0}', space=sflag, size = 0x4, scoped, tag = 'scoped memory for tpu_custom_call.1']
    #allocation4 [shape = 's32[1]{0}', space=sflag, size = 0x4, scoped, tag = 'scoped memory for tpu_custom_call.1']
    #allocation5 [shape = 'u8[512]{0}', space=vmem, size = 0x400, scoped, tag = 'input window, operand 1, single buffered']
    #allocation6 [shape = 's32[1]{0}', space=sflag, size = 0x4, scoped, tag = 'scoped memory for tpu_custom_call.1']
    #allocation7 [shape = 'u8[512]{0}', space=vmem, size = 0x400, scoped, tag = 'output window, operand 0, single buffered']
    %8 = vsyncpa [#allocation3], 0
    %9 = vsyncpa [#allocation6], 0
    %10 = vsyncpa [#allocation4], 0
    // Predicated region
    $region2: #{tpu_custom_call.1} parent=1 // pred_check
      _
    $region3: #{tpu_custom_call.1} parent=1 // pred_check_branch
      %12 = sbr.rel (0) target = $region5
    $region4: #{tpu_custom_call.1} parent=1 // pred_region
      %14 = vsyncadd [#allocation3], 0
      %s15 = sshll.u32 %s0, 4
      %s16 = int_to_ptr.hbm [resolvable:$true] %s15
      %s17 = sshll.u32 [#allocation2], 4
      %s18 = int_to_ptr.vmem [resolvable:$true] %s17
      %23 = dma.hbm_to_vmem [thread:$0]  %s16, 2048, %s18, [#allocation3], 128, 128, 8
    $region5: #{tpu_custom_call.1} parent=1 // pred_fallthru
      _
    // Predicated region
    $region6: #{tpu_custom_call.1} parent=1 // pred_check
      _
    $region7: #{tpu_custom_call.1} parent=1 // pred_check_branch
      %25 = sbr.rel (0) target = $region9
    $region8: #{tpu_custom_call.1} parent=1 // pred_region
      %27 = vsyncadd [#allocation6], 0
      %s29 = sshll.u32 %s1, 4
      %s30 = int_to_ptr.hbm [resolvable:$true] %s29
      %s31 = sshll.u32 [#allocation5], 4
      %s32 = int_to_ptr.vmem [resolvable:$true] %s31
      %34 = dma.hbm_to_vmem [thread:$0]  %s30, 16, %s32, [#allocation6]
    $region9: #{tpu_custom_call.1} parent=1 // pred_fallthru
      _
    // Predicated region
    $region10: #{tpu_custom_call.1} parent=1 // pred_check
      _
    $region11: #{tpu_custom_call.1} parent=1 // pred_check_branch
      %36 = sbr.rel (0) target = $region13
    $region12: #{tpu_custom_call.1} parent=1 // pred_region
      _
    $region13: #{tpu_custom_call.1} parent=1 // pred_fallthru
      _
    // Predicated region
    $region14: #{tpu_custom_call.1} parent=1 // pred_check
      _
    $region15: #{tpu_custom_call.1} parent=1 // pred_check_branch
      %38 = sbr.rel (0) target = $region17
    $region16: #{tpu_custom_call.1} parent=1 // pred_region
      %40 = dma.done [#allocation3], 2048
    $region17: #{tpu_custom_call.1} parent=1 // pred_fallthru
      _
    // Predicated region
    $region18: #{tpu_custom_call.1} parent=1 // pred_check
      _
    $region19: #{tpu_custom_call.1} parent=1 // pred_check_branch
      %42 = sbr.rel (0) target = $region21
    $region20: #{tpu_custom_call.1} parent=1 // pred_region
      %44 = dma.done [#allocation6], 16
    $region21: #{tpu_custom_call.1} parent=1 // pred_fallthru
      _
    %v45 = vld [vmem:[%s2] sm:$0x1]
    %v46 = vld [vmem:[#allocation2] sm:$0xff]
    %v47 = vld [vmem:[#allocation2 + $0x8] sm:$0xff]
    %v48 = vld [vmem:[#allocation2 + $0x10] sm:$0xff]
    %v49 = vld [vmem:[#allocation2 + $0x18] sm:$0xff]
    %v50 = vld [vmem:[#allocation2 + $0x20] sm:$0xff]
    %v51 = vld [vmem:[#allocation2 + $0x28] sm:$0xff]
    %v52 = vld [vmem:[#allocation2 + $0x30] sm:$0xff]
    %v53 = vld [vmem:[#allocation2 + $0x38] sm:$0xff]
    %v54 = vld [vmem:[#allocation2 + $0x40] sm:$0xff]
    %v55 = vld [vmem:[#allocation2 + $0x48] sm:$0xff]
    %v56 = vld [vmem:[#allocation2 + $0x50] sm:$0xff]
    %v57 = vld [vmem:[#allocation2 + $0x58] sm:$0xff]
    %v58 = vld [vmem:[#allocation2 + $0x60] sm:$0xff]
    %v59 = vld [vmem:[#allocation2 + $0x68] sm:$0xff]
    %v60 = vld [vmem:[#allocation2 + $0x70] sm:$0xff]
    %v61 = vld [vmem:[#allocation2 + $0x78] sm:$0xff]
    %v62 = vld [vmem:[#allocation5] sm:$0x1]
    %63 = vmatpush.msra.mxu0 %v61
    %64 = vmatpush.msra.mxu0 %v60
    %65 = vmatpush.msra.mxu0 %v59
    %66 = vmatpush.msra.mxu0 %v58
    %67 = vmatpush.msra.mxu0 %v57
    %68 = vmatpush.msra.mxu0 %v56
    %69 = vmatpush.msra.mxu0 %v55
    %70 = vmatpush.msra.mxu0 %v54
    %71 = vmatpush.msra.mxu0 %v53
    %72 = vmatpush.msra.mxu0 %v52
    %73 = vmatpush.msra.mxu0 %v51
    %74 = vmatpush.msra.mxu0 %v50
    %75 = vmatpush.msra.mxu0 %v49
    %76 = vmatpush.msra.mxu0 %v48
    %77 = vmatpush.msra.mxu0 %v47
    %78 = vmatpush.msra.mxu0 %v46
    %79 = vmatmul.f32.gmra.mxu0 %v45
    %v80 = vpop.f32.mrf.mxu0
    %v81 = vadd.f32 %v62, %v80
    %82 = vdwg.mxu0
    %83 = vst [vmem:[#allocation7] sm:$0x1] %v81
    // Predicated region
    $region22: #{tpu_custom_call.1} parent=1 // pred_check
      _
    $region23: #{tpu_custom_call.1} parent=1 // pred_check_branch
      %85 = sbr.rel (0) target = $region25
    $region24: #{tpu_custom_call.1} parent=1 // pred_region
      %87 = vsyncadd [#allocation4], 0
      %s89 = sshll.u32 [#allocation7], 4
      %s90 = int_to_ptr.vmem [resolvable:$true] %s89
      %s91 = sshll.u32 %s3, 4
      %s92 = int_to_ptr.hbm [resolvable:$true] %s91
      %94 = dma.vmem_to_hbm [thread:$0]  %s90, 16, %s92, [#allocation4]
    $region25: #{tpu_custom_call.1} parent=1 // pred_fallthru
      _
    // Predicated region
    $region26: #{tpu_custom_call.1} parent=1 // pred_check
      _
    $region27: #{tpu_custom_call.1} parent=1 // pred_check_branch
      %96 = sbr.rel (0) target = $region29
    $region28: #{tpu_custom_call.1} parent=1 // pred_region
      %98 = dma.done [#allocation4], 16
    $region29: #{tpu_custom_call.1} parent=1 // pred_fallthru
      _
    %99 = vsyncpa [#allocation3], 1
    %100 = vsyncpa [#allocation6], 1
    %101 = vsyncpa [#allocation4], 1

</llo_original>
